<compile_context>
chip_gen: v7x
topology: tpu7x:2x2x1
jax: 0.10.0
libtpu: 0.0.40
codegen_flags: <defaults>
</compile_context>

<pallas_src>
import functools

import jax
import jax.numpy as jnp
from jax.experimental import pallas as pl
from jax.experimental.pallas import tpu as pltpu

_LANE = 128
_SUBLANE = 8
_LEAKY_SLOPE = 0.01  # PyTorch nn.LeakyReLU default negative_slope


def _round_up(x, m):
    return ((x + m - 1) // m) * m


def _fused_mlp_kernel(x_ref, *refs, num_layers):
    """Fused MLP: [x@W+b -> LeakyReLU]*(L-1) -> x@W+b -> Sigmoid.

    refs = (w0, b0, w1, b1, ..., w_{L-1}, b_{L-1}, out).  All intermediates
    live in vregs; matmuls hit the MXU, LeakyReLU the VPU, sigmoid the EUP.
    """
    o_ref = refs[-1]
    h = x_ref[...]
    for i in range(num_layers):
        w = refs[2 * i][...]
        b = refs[2 * i + 1][...]
        h = jnp.dot(h, w, preferred_element_type=jnp.float32) + b
        if i + 1 < num_layers:
            # LeakyReLU: one vmul + one vmax (cheaper than cmp+select).
            h = jnp.maximum(h, jnp.float32(_LEAKY_SLOPE) * h)
        else:
            # Sigmoid via tanh -> EUP slot; keeps the VPU free of the divide.
            h = 0.5 * jnp.tanh(0.5 * h) + 0.5
    o_ref[...] = h.astype(o_ref.dtype)


def init_discriminator_params(key, input_dim, layers):
    """Deterministic init mimicking PyTorch nn.Linear defaults:
    W, b ~ U(-1/sqrt(fan_in), 1/sqrt(fan_in)).  Weights stored as (in, out)."""
    params = []
    last = input_dim
    for width in layers:
        key, kw, kb = jax.random.split(key, 3)
        bound = 1.0 / jnp.sqrt(jnp.float32(last))
        w = jax.random.uniform(kw, (last, width), jnp.float32, -bound, bound)
        b = jax.random.uniform(kb, (1, width), jnp.float32, -bound, bound)
        params.append((w, b))
        last = width
    return params


def discriminator_forward(x, params):
    """Forward pass of the full Discriminator as ONE fused Pallas kernel."""
    B, K = x.shape
    num_layers = len(params)
    n_out = params[-1][0].shape[1]

    # Lane-pad the last layer so the kernel's output block is lane-dense
    # (avoids masked partial stores for an (B, 1) output).  Zero-padded
    # columns just produce sigmoid(0)=0.5, which we slice away below.
    n_out_pad = _round_up(n_out, _LANE)
    w_last, b_last = params[-1]
    if n_out_pad != n_out:
        w_last = jnp.pad(w_last, ((0, 0), (0, n_out_pad - n_out)))
        b_last = jnp.pad(b_last, ((0, 0), (0, n_out_pad - n_out)))
    padded_params = list(params[:-1]) + [(w_last, b_last)]

    # Batch grid: TB rows per step (parallel -> megacore sharding on v7x).
    # Weights/biases use a constant index_map so they stay VMEM-resident.
    # NOTE: for very large batches on v6e one could cast x/W to bf16 for the
    # MXU (keeping preferred_element_type=f32); irrelevant at these sizes.
    TB = min(512, _round_up(B, _SUBLANE))
    B_pad = _round_up(B, TB)
    if B_pad != B:
        x = jnp.pad(x, ((0, B_pad - B), (0, 0)))
    grid = (B_pad // TB,)

    flat_inputs = [x]
    in_specs = [pl.BlockSpec((TB, K), lambda i: (i, 0))]
    for (w, b) in padded_params:
        kin, kout = w.shape
        flat_inputs.append(w)
        flat_inputs.append(b)
        in_specs.append(pl.BlockSpec((kin, kout), lambda i: (0, 0)))
        in_specs.append(pl.BlockSpec((1, kout), lambda i: (0, 0)))

    out = pl.pallas_call(
        functools.partial(_fused_mlp_kernel, num_layers=num_layers),
        out_shape=jax.ShapeDtypeStruct((B_pad, n_out_pad), x.dtype),
        grid=grid,
        in_specs=in_specs,
        out_specs=pl.BlockSpec((TB, n_out_pad), lambda i: (i, 0)),
        compiler_params=pltpu.CompilerParams(
            dimension_semantics=("parallel",)),
    )(x, *flat_inputs[1:])

    return out[:B, :n_out]


def _reference_forward(x, params):
    """Pure-JAX reference (same semantics as the PyTorch module)."""
    h = x
    for i, (w, b) in enumerate(params):
        h = h @ w + b
        if i + 1 < len(params):
            h = jnp.where(h >= 0, h, _LEAKY_SLOPE * h)
        else:
            h = jax.nn.sigmoid(h)
    return h


if __name__ == "__main__":
    # Discriminator(input_dim=32, layers=[64, 32, 1]) on a batch of 8 samples.
    input_dim = 32
    layers = [64, 32, 1]
    batch = 8

    key = jax.random.PRNGKey(0)
    key, kx = jax.random.split(key)
    x = jax.random.normal(kx, (batch, input_dim), jnp.float32)

    params = init_discriminator_params(key, input_dim, layers)

    out = jax.jit(discriminator_forward)(x, params)
    out = jax.block_until_ready(out)

    assert out.shape == (batch, layers[-1]), out.shape
    assert out.dtype == jnp.float32
    # Sigmoid output must lie in [0, 1].
    assert bool(jnp.all((out >= 0.0) & (out <= 1.0)))

    # Numerical check against a pure-JAX reference.
    ref = _reference_forward(x, params)
    assert bool(jnp.allclose(out, ref, rtol=1e-5, atol=1e-5)), (
        jnp.max(jnp.abs(out - ref)))

    print("KERNEL_OK")
</pallas_src>

<mosaic_0001>
module attributes {stable_mosaic.version = 11 : i64} {
  func.func @_fused_mlp_kernel(%arg0: i32, %arg1: memref<8x32xf32, #tpu.memory_space<vmem>>, %arg2: memref<32x64xf32, #tpu.memory_space<vmem>>, %arg3: memref<1x64xf32, #tpu.memory_space<vmem>>, %arg4: memref<64x32xf32, #tpu.memory_space<vmem>>, %arg5: memref<1x32xf32, #tpu.memory_space<vmem>>, %arg6: memref<32x128xf32, #tpu.memory_space<vmem>>, %arg7: memref<1x128xf32, #tpu.memory_space<vmem>>, %arg8: memref<8x128xf32, #tpu.memory_space<vmem>>) attributes {dimension_semantics = [#tpu.dimension_semantics<parallel>], iteration_bounds = array<i64: 1>, scalar_prefetch = 0 : i64, scratch_operands = 0 : i64, tpu.core_type = #tpu.core_type<tc>, window_params = [{transform_indices = @transform_0, window_bounds = array<i64: 8, 32>}, {pipeline_mode = #tpu.pipeline_mode<synchronous>, transform_indices = @transform_1, window_bounds = array<i64: 32, 64>}, {pipeline_mode = #tpu.pipeline_mode<synchronous>, transform_indices = @transform_2, window_bounds = array<i64: 1, 64>}, {pipeline_mode = #tpu.pipeline_mode<synchronous>, transform_indices = @transform_3, window_bounds = array<i64: 64, 32>}, {pipeline_mode = #tpu.pipeline_mode<synchronous>, transform_indices = @transform_4, window_bounds = array<i64: 1, 32>}, {pipeline_mode = #tpu.pipeline_mode<synchronous>, transform_indices = @transform_5, window_bounds = array<i64: 32, 128>}, {pipeline_mode = #tpu.pipeline_mode<synchronous>, transform_indices = @transform_6, window_bounds = array<i64: 1, 128>}, {transform_indices = @transform_7, window_bounds = array<i64: 8, 128>}]} {
    %c0 = arith.constant 0 : index
    %c0_0 = arith.constant 0 : index
    %0 = vector.load %arg1[%c0, %c0_0] : memref<8x32xf32, #tpu.memory_space<vmem>>, vector<8x32xf32>
    %c0_1 = arith.constant 0 : index
    %c0_2 = arith.constant 0 : index
    %1 = vector.load %arg2[%c0_1, %c0_2] : memref<32x64xf32, #tpu.memory_space<vmem>>, vector<32x64xf32>
    %c0_3 = arith.constant 0 : index
    %c0_4 = arith.constant 0 : index
    %2 = vector.load %arg3[%c0_3, %c0_4] : memref<1x64xf32, #tpu.memory_space<vmem>>, vector<1x64xf32>
    %cst = arith.constant dense<0.000000e+00> : vector<8x64xf32>
    %3 = tpu.matmul %0, %1, %cst {dimension_numbers = #tpu.dot_dimension_numbers<[1], [0], [0], [1], [0, 0, 1, 1], [], []>} : vector<8x32xf32>, vector<32x64xf32>, vector<8x64xf32> -> vector<8x64xf32>
    %4 = vector.broadcast %2 : vector<1x64xf32> to vector<8x64xf32>
    %5 = arith.addf %3, %4 : vector<8x64xf32>
    %cst_5 = arith.constant 0.00999999977 : f32
    %6 = vector.broadcast %cst_5 : f32 to vector<8x64xf32>
    %7 = arith.mulf %6, %5 : vector<8x64xf32>
    %8 = arith.maximumf %5, %7 : vector<8x64xf32>
    %c0_6 = arith.constant 0 : index
    %c0_7 = arith.constant 0 : index
    %9 = vector.load %arg4[%c0_6, %c0_7] : memref<64x32xf32, #tpu.memory_space<vmem>>, vector<64x32xf32>
    %c0_8 = arith.constant 0 : index
    %c0_9 = arith.constant 0 : index
    %10 = vector.load %arg5[%c0_8, %c0_9] : memref<1x32xf32, #tpu.memory_space<vmem>>, vector<1x32xf32>
    %cst_10 = arith.constant dense<0.000000e+00> : vector<8x32xf32>
    %11 = tpu.matmul %8, %9, %cst_10 {dimension_numbers = #tpu.dot_dimension_numbers<[1], [0], [0], [1], [0, 0, 1, 1], [], []>} : vector<8x64xf32>, vector<64x32xf32>, vector<8x32xf32> -> vector<8x32xf32>
    %12 = vector.broadcast %10 : vector<1x32xf32> to vector<8x32xf32>
    %13 = arith.addf %11, %12 : vector<8x32xf32>
    %cst_11 = arith.constant 0.00999999977 : f32
    %14 = vector.broadcast %cst_11 : f32 to vector<8x32xf32>
    %15 = arith.mulf %14, %13 : vector<8x32xf32>
    %16 = arith.maximumf %13, %15 : vector<8x32xf32>
    %c0_12 = arith.constant 0 : index
    %c0_13 = arith.constant 0 : index
    %17 = vector.load %arg6[%c0_12, %c0_13] : memref<32x128xf32, #tpu.memory_space<vmem>>, vector<32x128xf32>
    %c0_14 = arith.constant 0 : index
    %c0_15 = arith.constant 0 : index
    %18 = vector.load %arg7[%c0_14, %c0_15] : memref<1x128xf32, #tpu.memory_space<vmem>>, vector<1x128xf32>
    %cst_16 = arith.constant dense<0.000000e+00> : vector<8x128xf32>
    %19 = tpu.matmul %16, %17, %cst_16 {dimension_numbers = #tpu.dot_dimension_numbers<[1], [0], [0], [1], [0, 0, 1, 1], [], []>} : vector<8x32xf32>, vector<32x128xf32>, vector<8x128xf32> -> vector<8x128xf32>
    %20 = vector.broadcast %18 : vector<1x128xf32> to vector<8x128xf32>
    %21 = arith.addf %19, %20 : vector<8x128xf32>
    %cst_17 = arith.constant 5.000000e-01 : f32
    %22 = vector.broadcast %cst_17 : f32 to vector<8x128xf32>
    %23 = arith.mulf %22, %21 : vector<8x128xf32>
    %24 = math.tanh %23 : vector<8x128xf32>
    %cst_18 = arith.constant 5.000000e-01 : f32
    %25 = vector.broadcast %cst_18 : f32 to vector<8x128xf32>
    %26 = arith.mulf %25, %24 : vector<8x128xf32>
    %cst_19 = arith.constant 5.000000e-01 : f32
    %27 = vector.broadcast %cst_19 : f32 to vector<8x128xf32>
    %28 = arith.addf %26, %27 : vector<8x128xf32>
    %c0_20 = arith.constant 0 : index
    %c0_21 = arith.constant 0 : index
    %29 = vector.load %arg8[%c0_20, %c0_21] : memref<8x128xf32, #tpu.memory_space<vmem>>, vector<8x128xf32>
    tpu.vector_store %arg8[%c0_20, %c0_21], %28 {strides = array<i32>} : memref<8x128xf32, #tpu.memory_space<vmem>>, vector<8x128xf32>,
    return
  }
  func.func @transform_0(%arg0: i32) -> (i32, i32) {
    %c0_i32 = arith.constant 0 : i32
    %c0_i32_0 = arith.constant 0 : i32
    return %arg0, %c0_i32 : i32, i32
  }
  func.func @transform_1(%arg0: i32) -> (i32, i32) {
    %c0_i32 = arith.constant 0 : i32
    %c0_i32_0 = arith.constant 0 : i32
    %c0_i32_1 = arith.constant 0 : i32
    return %c0_i32, %c0_i32_0 : i32, i32
  }
  func.func @transform_2(%arg0: i32) -> (i32, i32) {
    %c0_i32 = arith.constant 0 : i32
    %c0_i32_0 = arith.constant 0 : i32
    %c0_i32_1 = arith.constant 0 : i32
    return %c0_i32, %c0_i32_0 : i32, i32
  }
  func.func @transform_3(%arg0: i32) -> (i32, i32) {
    %c0_i32 = arith.constant 0 : i32
    %c0_i32_0 = arith.constant 0 : i32
    %c0_i32_1 = arith.constant 0 : i32
    return %c0_i32, %c0_i32_0 : i32, i32
  }
  func.func @transform_4(%arg0: i32) -> (i32, i32) {
    %c0_i32 = arith.constant 0 : i32
    %c0_i32_0 = arith.constant 0 : i32
    %c0_i32_1 = arith.constant 0 : i32
    return %c0_i32, %c0_i32_0 : i32, i32
  }
  func.func @transform_5(%arg0: i32) -> (i32, i32) {
    %c0_i32 = arith.constant 0 : i32
    %c0_i32_0 = arith.constant 0 : i32
    %c0_i32_1 = arith.constant 0 : i32
    return %c0_i32, %c0_i32_0 : i32, i32
  }
  func.func @transform_6(%arg0: i32) -> (i32, i32) {
    %c0_i32 = arith.constant 0 : i32
    %c0_i32_0 = arith.constant 0 : i32
    %c0_i32_1 = arith.constant 0 : i32
    return %c0_i32, %c0_i32_0 : i32, i32
  }
  func.func @transform_7(%arg0: i32) -> (i32, i32) {
    %c0_i32 = arith.constant 0 : i32
    %c0_i32_0 = arith.constant 0 : i32
    return %arg0, %c0_i32 : i32, i32
  }
}

</mosaic_0001>

<llo_original>
// kernel: discriminator_forward.1
$region0: #{discriminator_forward.1}
  #allocation0 [shape = 'u32[]', space=smem, size = 0x4, offset = 0x4, fixed_abs, tag = 'smem constant byte address 0x4 - core index']
  #allocation1 [shape = 'u32[144,128]{1,0:T(1,128)}', space=vmem, size = 0x12000, scoped, tag = 'internal scratch']
  %s0 = inlined_call_operand.vmem [shape: f32[8,32], index: 0, kind: input, shape index: {}]
  %s1 = inlined_call_operand.vmem [shape: f32[32,64], index: 1, kind: input, shape index: {}]
  %s2 = inlined_call_operand.vmem [shape: f32[1,64], index: 2, kind: input, shape index: {}]
  %s3 = inlined_call_operand.vmem [shape: f32[64,32], index: 3, kind: input, shape index: {}]
  %s4 = inlined_call_operand.vmem [shape: f32[1,32], index: 4, kind: input, shape index: {}]
  %s5 = inlined_call_operand.vmem [shape: f32[32,128], index: 5, kind: input, shape index: {}]
  %s6 = inlined_call_operand.vmem [shape: f32[1,128], index: 6, kind: input, shape index: {}]
  %s7 = inlined_call_operand.vmem [shape: f32[8,128], index: 7, kind: output, shape index: {}]
  %s8 = sld [smem:[#allocation0]]
  $region38: #{discriminator_forward.1} parent=0
    _
  %s10 = ssub.s32 1, %s8
  %s11 = scalar_select 0, %s10, %s8
  // Predicated region
  $region2: #{discriminator_forward.1} parent=0 // pred_check
    _
  $region3: #{discriminator_forward.1} parent=0 // pred_check_branch
    %13 = sbr.rel (0) target = $region5
  $region4: #{discriminator_forward.1} parent=0 // pred_region
    _
  $region5: #{discriminator_forward.1} parent=0 // pred_fallthru
    _
  // Predicated region
  $region6: #{discriminator_forward.1} parent=0 // pred_check
    _
  $region7: #{discriminator_forward.1} parent=0 // pred_check_branch
    %15 = sbr.rel (0) target = $region9
  $region8: #{discriminator_forward.1} parent=0 // pred_region
    _
  $region9: #{discriminator_forward.1} parent=0 // pred_fallthru
    _
  // Predicated region
  $region10: #{discriminator_forward.1} parent=0 // pred_check
    _
  $region11: #{discriminator_forward.1} parent=0 // pred_check_branch
    %17 = sbr.rel (0) target = $region13
  $region12: #{discriminator_forward.1} parent=0 // pred_region
    _
  $region13: #{discriminator_forward.1} parent=0 // pred_fallthru
    _
  // Predicated region
  $region14: #{discriminator_forward.1} parent=0 // pred_check
    _
  $region15: #{discriminator_forward.1} parent=0 // pred_check_branch
    %19 = sbr.rel (0) target = $region17
  $region16: #{discriminator_forward.1} parent=0 // pred_region
    _
  $region17: #{discriminator_forward.1} parent=0 // pred_fallthru
    _
  // Predicated region
  $region18: #{discriminator_forward.1} parent=0 // pred_check
    _
  $region19: #{discriminator_forward.1} parent=0 // pred_check_branch
    %21 = sbr.rel (0) target = $region21
  $region20: #{discriminator_forward.1} parent=0 // pred_region
    _
  $region21: #{discriminator_forward.1} parent=0 // pred_fallthru
    _
  // Predicated region
  $region22: #{discriminator_forward.1} parent=0 // pred_check
    _
  $region23: #{discriminator_forward.1} parent=0 // pred_check_branch
    %23 = sbr.rel (0) target = $region25
  $region24: #{discriminator_forward.1} parent=0 // pred_region
    _
  $region25: #{discriminator_forward.1} parent=0 // pred_fallthru
    _
  // Predicated region
  $region26: #{discriminator_forward.1} parent=0 // pred_check
    _
  $region27: #{discriminator_forward.1} parent=0 // pred_check_branch
    %25 = sbr.rel (0) target = $region29
  $region28: #{discriminator_forward.1} parent=0 // pred_region
    _
  $region29: #{discriminator_forward.1} parent=0 // pred_fallthru
    _
  %v26 = vld [vmem:[%s0] sm:$0xff]
  %v27 = vld [vmem:[%s1] sm:$0xff]
  %v28 = vld [vmem:[%s1 + $0x8] sm:$0xff]
  %v29 = vld [vmem:[%s1 + $0x10] sm:$0xff]
  %v30 = vld [vmem:[%s1 + $0x18] sm:$0xff]
  %v31 = vld [vmem:[%s2] sm:$0x1]
  %v33 = vlaneseq
  %v34 = vshrl.u32 %v33, 7
  %v35 = vsub.s32 0, %v34
  %v36 = vrot.slane %v31, %v35
  %vm38 = vcmask 261120
  %v40 = vsel %vm38, %v26, 0
  %42 = vmatprep.subr.mxu0 0.0
  %43 = vmatpush1.msra.mxu0 %v27
  %44 = vmatprep.subr.mxu0 0.0
  %45 = vmatpush1.msra.mxu0 %v28
  %46 = vmatprep.subr.mxu0 0.0
  %47 = vmatpush1.msra.mxu0 %v29
  %48 = vmatprep.subr.mxu0 0.0
  %49 = vmatpush1.msra.mxu0 %v30
  %50 = vmatprep.subr.mxu0 0.0
  %51 = vmatpush1.msra.mxu0 0.0
  %52 = vmatprep.subr.mxu0 0.0
  %53 = vmatpush1.msra.mxu0 0.0
  %54 = vmatprep.subr.mxu0 0.0
  %55 = vmatpush1.msra.mxu0 0.0
  %56 = vmatprep.subr.mxu0 0.0
  %57 = vmatpush1.msra.mxu0 0.0
  %58 = vmatprep.subr.mxu0 0.0
  %59 = vmatpush1.msra.mxu0 0.0
  %60 = vmatprep.subr.mxu0 0.0
  %61 = vmatpush1.msra.mxu0 0.0
  %62 = vmatprep.subr.mxu0 0.0
  %63 = vmatpush1.msra.mxu0 0.0
  %64 = vmatprep.subr.mxu0 0.0
  %65 = vmatpush1.msra.mxu0 0.0
  %66 = vmatprep.subr.mxu0 0.0
  %67 = vmatpush1.msra.mxu0 0.0
  %68 = vmatprep.subr.mxu0 0.0
  %69 = vmatpush1.msra.mxu0 0.0
  %70 = vmatprep.subr.mxu0 0.0
  %71 = vmatpush1.msra.mxu0 0.0
  %72 = vmatprep.subr.mxu0 0.0
  %73 = vmatpush1.msra.mxu0 0.0
  %74 = vmatprep.subr.mxu0 0.0
  %75 = vmatpush1.msra.mxu0 0.0
  %76 = vmatprep.subr.mxu0 0.0
  %77 = vmatpush1.msra.mxu0 0.0
  %78 = vmatprep.subr.mxu0 0.0
  %79 = vmatpush1.msra.mxu0 0.0
  %80 = vmatprep.subr.mxu0 0.0
  %81 = vmatpush1.msra.mxu0 0.0
  %82 = vmatprep.subr.mxu0 0.0
  %83 = vmatpush1.msra.mxu0 0.0
  %84 = vmatprep.subr.mxu0 0.0
  %85 = vmatpush1.msra.mxu0 0.0
  %86 = vmatprep.subr.mxu0 0.0
  %87 = vmatpush1.msra.mxu0 0.0
  %88 = vmatprep.subr.mxu0 0.0
  %89 = vmatpush1.msra.mxu0 0.0
  %90 = vmatprep.subr.mxu0 0.0
  %91 = vmatpush1.msra.mxu0 0.0
  %92 = vmatprep.subr.mxu0 0.0
  %93 = vmatpush1.msra.mxu0 0.0
  %94 = vmatprep.subr.mxu0 0.0
  %95 = vmatpush1.msra.mxu0 0.0
  %96 = vmatprep.subr.mxu0 0.0
  %97 = vmatpush1.msra.mxu0 0.0
  %98 = vmatprep.subr.mxu0 0.0
  %99 = vmatpush1.msra.mxu0 0.0
  %100 = vmatprep.subr.mxu0 0.0
  %101 = vmatpush1.msra.mxu0 0.0
  %102 = vmatprep.subr.mxu0 0.0
  %103 = vmatpush1.msra.mxu0 0.0
  %104 = vmatprep.subr.mxu0 0.0
  %105 = vmatpush1.msra.mxu0 0.0
  %106 = vmatprep.mubr.f32.mxu0 0.0
  %107 = vmatmul.mubr.f32.gmra.mrb[0].mxu0 %v40
  %v108 = vpop.f32.mrb[0].mxu0
  %v109 = vadd.f32 %v36, %v108
  %v110 = vpop.f32.mrb[0].mxu0
  %111 = vdwg.mxu0
  %v112 = vmul.f32 %v109, 0.01
  %v113 = vmax.f32 %v109, %v112
  %v114 = vld [vmem:[%s3] sm:$0xff]
  %v115 = vld [vmem:[%s3 + $0x8] sm:$0xff]
  %v116 = vld [vmem:[%s3 + $0x10] sm:$0xff]
  %v117 = vld [vmem:[%s3 + $0x18] sm:$0xff]
  %v118 = vld [vmem:[%s3 + $0x20] sm:$0xff]
  %v119 = vld [vmem:[%s3 + $0x28] sm:$0xff]
  %v120 = vld [vmem:[%s3 + $0x30] sm:$0xff]
  %v121 = vld [vmem:[%s3 + $0x38] sm:$0xff]
  %v122 = vld [vmem:[%s4] sm:$0x1]
  %v124 = vlaneseq
  %v125 = vshrl.u32 %v124, 7
  %v126 = vsub.s32 0, %v125
  %v127 = vrot.slane %v122, %v126
  %vm129 = vcmask 523264
  %v131 = vsel %vm129, %v113, 0
  %133 = vmatprep.subr.mxu0 0.0
  %134 = vmatpush1.msra.mxu0 %v114
  %135 = vmatprep.subr.mxu0 0.0
  %136 = vmatpush1.msra.mxu0 %v115
  %137 = vmatprep.subr.mxu0 0.0
  %138 = vmatpush1.msra.mxu0 %v116
  %139 = vmatprep.subr.mxu0 0.0
  %140 = vmatpush1.msra.mxu0 %v117
  %141 = vmatprep.subr.mxu0 0.0
  %142 = vmatpush1.msra.mxu0 %v118
  %143 = vmatprep.subr.mxu0 0.0
  %144 = vmatpush1.msra.mxu0 %v119
  %145 = vmatprep.subr.mxu0 0.0
  %146 = vmatpush1.msra.mxu0 %v120
  %147 = vmatprep.subr.mxu0 0.0
  %148 = vmatpush1.msra.mxu0 %v121
  %149 = vmatprep.subr.mxu0 0.0
  %150 = vmatpush1.msra.mxu0 0.0
  %151 = vmatprep.subr.mxu0 0.0
  %152 = vmatpush1.msra.mxu0 0.0
  %153 = vmatprep.subr.mxu0 0.0
  %154 = vmatpush1.msra.mxu0 0.0
  %155 = vmatprep.subr.mxu0 0.0
  %156 = vmatpush1.msra.mxu0 0.0
  %157 = vmatprep.subr.mxu0 0.0
  %158 = vmatpush1.msra.mxu0 0.0
  %159 = vmatprep.subr.mxu0 0.0
  %160 = vmatpush1.msra.mxu0 0.0
  %161 = vmatprep.subr.mxu0 0.0
  %162 = vmatpush1.msra.mxu0 0.0
  %163 = vmatprep.subr.mxu0 0.0
  %164 = vmatpush1.msra.mxu0 0.0
  %165 = vmatprep.subr.mxu0 0.0
  %166 = vmatpush1.msra.mxu0 0.0
  %167 = vmatprep.subr.mxu0 0.0
  %168 = vmatpush1.msra.mxu0 0.0
  %169 = vmatprep.subr.mxu0 0.0
  %170 = vmatpush1.msra.mxu0 0.0
  %171 = vmatprep.subr.mxu0 0.0
  %172 = vmatpush1.msra.mxu0 0.0
  %173 = vmatprep.subr.mxu0 0.0
  %174 = vmatpush1.msra.mxu0 0.0
  %175 = vmatprep.subr.mxu0 0.0
  %176 = vmatpush1.msra.mxu0 0.0
  %177 = vmatprep.subr.mxu0 0.0
  %178 = vmatpush1.msra.mxu0 0.0
  %179 = vmatprep.subr.mxu0 0.0
  %180 = vmatpush1.msra.mxu0 0.0
  %181 = vmatprep.subr.mxu0 0.0
  %182 = vmatpush1.msra.mxu0 0.0
  %183 = vmatprep.subr.mxu0 0.0
  %184 = vmatpush1.msra.mxu0 0.0
  %185 = vmatprep.subr.mxu0 0.0
  %186 = vmatpush1.msra.mxu0 0.0
  %187 = vmatprep.subr.mxu0 0.0
  %188 = vmatpush1.msra.mxu0 0.0
  %189 = vmatprep.subr.mxu0 0.0
  %190 = vmatpush1.msra.mxu0 0.0
  %191 = vmatprep.subr.mxu0 0.0
  %192 = vmatpush1.msra.mxu0 0.0
  %193 = vmatprep.subr.mxu0 0.0
  %194 = vmatpush1.msra.mxu0 0.0
  %195 = vmatprep.subr.mxu0 0.0
  %196 = vmatpush1.msra.mxu0 0.0
  %197 = vmatprep.mubr.f32.mxu0 0.0
  %198 = vmatmul.mubr.f32.gmra.mrb[0].mxu0 %v131
  %v199 = vpop.f32.mrb[0].mxu0
  %v200 = vadd.f32 %v127, %v199
  %v201 = vpop.f32.mrb[0].mxu0
  %202 = vdwg.mxu0
  %v203 = vmul.f32 %v200, 0.01
  %v204 = vmax.f32 %v200, %v203
  %v205 = vld [vmem:[%s5] sm:$0xff]
  %v206 = vld [vmem:[%s5 + $0x8] sm:$0xff]
  %v207 = vld [vmem:[%s5 + $0x10] sm:$0xff]
  %v208 = vld [vmem:[%s5 + $0x18] sm:$0xff]
  %v209 = vld [vmem:[%s6] sm:$0x1]
  %v211 = vlaneseq
  %v212 = vshrl.u32 %v211, 7
  %v213 = vsub.s32 0, %v212
  %v214 = vrot.slane %v209, %v213
  %v217 = vsel %vm38, %v204, 0
  %219 = vmatprep.subr.mxu0 0.0
  %220 = vmatpush1.msra.mxu0 %v205
  %221 = vmatprep.subr.mxu0 0.0
  %222 = vmatpush1.msra.mxu0 %v206
  %223 = vmatprep.subr.mxu0 0.0
  %224 = vmatpush1.msra.mxu0 %v207
  %225 = vmatprep.subr.mxu0 0.0
  %226 = vmatpush1.msra.mxu0 %v208
  %227 = vmatprep.subr.mxu0 0.0
  %228 = vmatpush1.msra.mxu0 0.0
  %229 = vmatprep.subr.mxu0 0.0
  %230 = vmatpush1.msra.mxu0 0.0
  %231 = vmatprep.subr.mxu0 0.0
  %232 = vmatpush1.msra.mxu0 0.0
  %233 = vmatprep.subr.mxu0 0.0
  %234 = vmatpush1.msra.mxu0 0.0
  %235 = vmatprep.subr.mxu0 0.0
  %236 = vmatpush1.msra.mxu0 0.0
  %237 = vmatprep.subr.mxu0 0.0
  %238 = vmatpush1.msra.mxu0 0.0
  %239 = vmatprep.subr.mxu0 0.0
  %240 = vmatpush1.msra.mxu0 0.0
  %241 = vmatprep.subr.mxu0 0.0
  %242 = vmatpush1.msra.mxu0 0.0
  %243 = vmatprep.subr.mxu0 0.0
  %244 = vmatpush1.msra.mxu0 0.0
  %245 = vmatprep.subr.mxu0 0.0
  %246 = vmatpush1.msra.mxu0 0.0
  %247 = vmatprep.subr.mxu0 0.0
  %248 = vmatpush1.msra.mxu0 0.0
  %249 = vmatprep.subr.mxu0 0.0
  %250 = vmatpush1.msra.mxu0 0.0
  %251 = vmatprep.subr.mxu0 0.0
  %252 = vmatpush1.msra.mxu0 0.0
  %253 = vmatprep.subr.mxu0 0.0
  %254 = vmatpush1.msra.mxu0 0.0
  %255 = vmatprep.subr.mxu0 0.0
  %256 = vmatpush1.msra.mxu0 0.0
  %257 = vmatprep.subr.mxu0 0.0
  %258 = vmatpush1.msra.mxu0 0.0
  %259 = vmatprep.subr.mxu0 0.0
  %260 = vmatpush1.msra.mxu0 0.0
  %261 = vmatprep.subr.mxu0 0.0
  %262 = vmatpush1.msra.mxu0 0.0
  %263 = vmatprep.subr.mxu0 0.0
  %264 = vmatpush1.msra.mxu0 0.0
  %265 = vmatprep.subr.mxu0 0.0
  %266 = vmatpush1.msra.mxu0 0.0
  %267 = vmatprep.subr.mxu0 0.0
  %268 = vmatpush1.msra.mxu0 0.0
  %269 = vmatprep.subr.mxu0 0.0
  %270 = vmatpush1.msra.mxu0 0.0
  %271 = vmatprep.subr.mxu0 0.0
  %272 = vmatpush1.msra.mxu0 0.0
  %273 = vmatprep.subr.mxu0 0.0
  %274 = vmatpush1.msra.mxu0 0.0
  %275 = vmatprep.subr.mxu0 0.0
  %276 = vmatpush1.msra.mxu0 0.0
  %277 = vmatprep.subr.mxu0 0.0
  %278 = vmatpush1.msra.mxu0 0.0
  %279 = vmatprep.subr.mxu0 0.0
  %280 = vmatpush1.msra.mxu0 0.0
  %281 = vmatprep.subr.mxu0 0.0
  %282 = vmatpush1.msra.mxu0 0.0
  %283 = vmatprep.mubr.f32.mxu0 0.0
  %284 = vmatmul.mubr.f32.gmra.mrb[0].mxu0 %v217
  %v285 = vpop.f32.mrb[0].mxu0
  %v286 = vadd.f32 %v214, %v285
  %v287 = vpop.f32.mrb[0].mxu0
  %288 = vdwg.mxu0
  %v289 = vmul.f32 %v286, 0.5
  %v290 = vtanh.pop %v289
  %v291 = vmul.f32 %v290, 0.5
  %v292 = vadd.f32 %v291, 0.5
  %293 = vst [vmem:[%s7] sm:$0xff] %v292
  // Predicated region
  $region30: #{discriminator_forward.1} parent=0 // pred_check
    _
  $region31: #{discriminator_forward.1} parent=0 // pred_check_branch
    %295 = sbr.rel (0) target = $region33
  $region32: #{discriminator_forward.1} parent=0 // pred_region
    _
  $region33: #{discriminator_forward.1} parent=0 // pred_fallthru
    _
  // Predicated region
  $region34: #{discriminator_forward.1} parent=0 // pred_check
    _
  $region35: #{discriminator_forward.1} parent=0 // pred_check_branch
    %297 = sbr.rel (0) target = $region37
  $region36: #{discriminator_forward.1} parent=0 // pred_region
    _
  $region37: #{discriminator_forward.1} parent=0 // pred_fallthru
    _

</llo_original>
